<compile_context>
chip_gen: v6e
topology: v6e:2x2x1
jax: 0.10.0
libtpu: 0.0.40
codegen_flags: <defaults>
</compile_context>

<pallas_src>
import functools

import jax
import jax.numpy as jnp
from jax.experimental import pallas as pl
from jax.experimental.pallas import tpu as pltpu

_LANE = 128
_SUBLANE = 8


def _round_up(x, m):
    return (x + m - 1) // m * m


def _sigmoid_f32(z):
    # Mathematically identical to 1/(1+exp(-z)) but costs a single EUP
    # transcendental (tanh) instead of exp + divide.
    return 0.5 * (jnp.tanh(0.5 * z) + 1.0)


def _mlp_kernel(x_ref, w1_ref, b1_ref, w2_ref, b2_ref, w3_ref, b3_ref, o_ref):
    """Fused 3-layer MLP forward for one batch tile.

    Matmul operands run in the weights' dtype (f32 or bf16) with f32
    accumulation on the MXU; activations run in f32 on the EUP/VPU. Biases
    arrive pre-cast to f32.
    """
    cd = w1_ref.dtype  # compute dtype for MXU operands
    x = x_ref[...].astype(cd)

    z1 = jnp.dot(x, w1_ref[...], preferred_element_type=jnp.float32) + b1_ref[...]
    h1 = _sigmoid_f32(z1).astype(cd)

    z2 = jnp.dot(h1, w2_ref[...], preferred_element_type=jnp.float32) + b2_ref[...]
    h2 = _sigmoid_f32(z2).astype(cd)

    y = jnp.dot(h2, w3_ref[...], preferred_element_type=jnp.float32) + b3_ref[...]
    o_ref[...] = y.astype(o_ref.dtype)


def prepare_params(w1, b1, w2, b2, w3, b3, *, matmul_dtype=None):
    """One-time parameter preparation (call once, reuse across forwards).

    * Weights expected as (fan_in, fan_out) (transposed vs. torch Linear.weight).
    * Pads H1/H2/D_out to multiples of 128 with zeros (exact math: padded
      hidden lanes become sigmoid(0)=0.5 but multiply zero rows of the next
      weight, so they contribute nothing).
    * Biases are reshaped to (1, H) and pre-cast to f32.
    * matmul_dtype=jnp.bfloat16 opts into bf16 MXU operands (f32 accumulate).
    Returns (padded_params_tuple, d_out).
    """
    d_in, h1 = w1.shape
    h2 = w2.shape[1]
    d_out = w3.shape[1]
    h1p, h2p, dop = (_round_up(v, _LANE) for v in (h1, h2, d_out))
    wd = w1.dtype if matmul_dtype is None else matmul_dtype

    w1p = jnp.pad(w1, ((0, 0), (0, h1p - h1))).astype(wd)
    w2p = jnp.pad(w2, ((0, h1p - h1), (0, h2p - h2))).astype(wd)
    w3p = jnp.pad(w3, ((0, h2p - h2), (0, dop - d_out))).astype(wd)
    b1p = jnp.pad(b1.reshape(1, -1), ((0, 0), (0, h1p - h1))).astype(jnp.float32)
    b2p = jnp.pad(b2.reshape(1, -1), ((0, 0), (0, h2p - h2))).astype(jnp.float32)
    b3p = jnp.pad(b3.reshape(1, -1), ((0, 0), (0, dop - d_out))).astype(jnp.float32)
    return (w1p, b1p, w2p, b2p, w3p, b3p), int(d_out)


def _resident_spec(shape):
    """Constant-index (weight/bias) block: stays resident across the batch
    grid. Single-buffered when the JAX version supports pipeline_mode."""
    idx = lambda i: (0, 0)
    if hasattr(pl, "Buffered"):
        try:
            return pl.BlockSpec(shape, idx, pipeline_mode=pl.Buffered(1))
        except TypeError:
            pass
    return pl.BlockSpec(shape, idx)


@functools.partial(jax.jit, static_argnames=("d_out", "batch_tile"))
def mlp_forward(x, w1p, b1p, w2p, b2p, w3p, b3p, *, d_out, batch_tile=512):
    B, d_in = x.shape
    h1p = w1p.shape[1]
    h2p = w2p.shape[1]
    dop = w3p.shape[1]

    x_isz = jnp.dtype(x.dtype).itemsize
    w_isz = jnp.dtype(w1p.dtype).itemsize

    # --- VMEM-aware batch-tile selection (no forced multi-step split). ---
    def vmem_est(b):
        return (2 * b * d_in * x_isz                      # x tile (double-buffered)
                + 2 * b * dop * x_isz                     # out tile (double-buffered)
                + (d_in * h1p + h1p * h2p + h2p * dop) * w_isz  # resident weights (1 buf)
                + (h1p + h2p + dop) * 4                   # f32 biases
                + 4 * b * (h1p + h2p) * 4)                # f32 intermediates + headroom

    bt = min(batch_tile, _round_up(B, _SUBLANE))
    budget = 12 * 1024 * 1024  # safe under v5e's 16 MiB scoped default / v7x 64 MiB
    while vmem_est(bt) > budget and bt > _SUBLANE:
        bt = max(_SUBLANE, _round_up(bt // 2, _SUBLANE))

    B_pad = _round_up(B, bt)
    grid = (B_pad // bt,)
    xp = x if B_pad == B else jnp.pad(x, ((0, B_pad - B), (0, 0)))

    # --- Advisory cost estimate for XLA scheduling around the custom call. ---
    flops = 2 * B_pad * (d_in * h1p + h1p * h2p + h2p * dop)
    transcendentals = B_pad * (h1p + h2p)
    bytes_accessed = (x_isz * B_pad * (d_in + dop)
                      + w_isz * (d_in * h1p + h1p * h2p + h2p * dop)
                      + 4 * (h1p + h2p + dop))

    vmem_limit = int(min(max(2 * vmem_est(bt), 16 * 1024 * 1024),
                         100 * 1024 * 1024))

    out = pl.pallas_call(
        _mlp_kernel,
        out_shape=jax.ShapeDtypeStruct((B_pad, dop), x.dtype),
        grid_spec=pl.GridSpec(
            grid=grid,
            in_specs=[
                pl.BlockSpec((bt, d_in), lambda i: (i, 0)),   # streaming x tile
                _resident_spec((d_in, h1p)), _resident_spec((1, h1p)),
                _resident_spec((h1p, h2p)), _resident_spec((1, h2p)),
                _resident_spec((h2p, dop)), _resident_spec((1, dop)),
            ],
            out_specs=pl.BlockSpec((bt, dop), lambda i: (i, 0)),
        ),
        compiler_params=pltpu.CompilerParams(
            dimension_semantics=("parallel",),
            vmem_limit_bytes=vmem_limit),
        cost_estimate=pl.CostEstimate(
            flops=flops,
            transcendentals=transcendentals,
            bytes_accessed=bytes_accessed),
    )(xp, w1p, b1p, w2p, b2p, w3p, b3p)

    # Strip batch padding and the lane-padded output columns.
    return out[:B, :d_out]


def init_linear(key, fan_in, fan_out, dtype=jnp.float32):
    """Mirrors PyTorch's default U(-1/sqrt(fan_in), 1/sqrt(fan_in)) init.

    Returns weight already transposed to (fan_in, fan_out) and bias (1, fan_out).
    """
    kw, kb = jax.random.split(key)
    bound = 1.0 / jnp.sqrt(jnp.array(fan_in, dtype))
    w = jax.random.uniform(kw, (fan_in, fan_out), dtype, -bound, bound)
    b = jax.random.uniform(kb, (1, fan_out), dtype, -bound, bound)
    return w, b


def reference_forward(x, w1, b1, w2, b2, w3, b3):
    h1 = jax.nn.sigmoid(x @ w1 + b1)
    h2 = jax.nn.sigmoid(h1 @ w2 + b2)
    return h2 @ w3 + b3


if __name__ == "__main__":
    # Small shapes consistent with the module: Net(D_in, H1, H2, D_out)
    B, D_in, H1, H2, D_out = 64, 32, 64, 64, 16

    key = jax.random.PRNGKey(0)
    kx, k1, k2, k3 = jax.random.split(key, 4)

    x = jax.random.normal(kx, (B, D_in), jnp.float32)
    w1, b1 = init_linear(k1, D_in, H1)
    w2, b2 = init_linear(k2, H1, H2)
    w3, b3 = init_linear(k3, H2, D_out)

    # One-time parameter preparation (padding hoisted out of the forward).
    params, d_out = prepare_params(w1, b1, w2, b2, w3, b3)

    y = mlp_forward(x, *params, d_out=d_out)
    y = jax.block_until_ready(y)

    y_ref = reference_forward(x, w1, b1, w2, b2, w3, b3)
    assert y.shape == (B, D_out)
    assert jnp.allclose(y, y_ref, atol=1e-5, rtol=1e-5), float(
        jnp.max(jnp.abs(y - y_ref)))

    print("KERNEL_OK")
</pallas_src>

<mosaic_0001>
module attributes {stable_mosaic.version = 11 : i64} {
  func.func @_mlp_kernel(%arg0: i32, %arg1: memref<64x32xf32, #tpu.memory_space<vmem>>, %arg2: memref<32x128xf32, #tpu.memory_space<vmem>>, %arg3: memref<1x128xf32, #tpu.memory_space<vmem>>, %arg4: memref<128x128xf32, #tpu.memory_space<vmem>>, %arg5: memref<1x128xf32, #tpu.memory_space<vmem>>, %arg6: memref<128x128xf32, #tpu.memory_space<vmem>>, %arg7: memref<1x128xf32, #tpu.memory_space<vmem>>, %arg8: memref<64x128xf32, #tpu.memory_space<vmem>>) attributes {dimension_semantics = [#tpu.dimension_semantics<parallel>], iteration_bounds = array<i64: 1>, scalar_prefetch = 0 : i64, scratch_operands = 0 : i64, tpu.core_type = #tpu.core_type<tc>, window_params = [{transform_indices = @transform_0, window_bounds = array<i64: 64, 32>}, {pipeline_mode = #tpu.pipeline_mode<synchronous>, transform_indices = @transform_1, window_bounds = array<i64: 32, 128>}, {pipeline_mode = #tpu.pipeline_mode<synchronous>, transform_indices = @transform_2, window_bounds = array<i64: 1, 128>}, {pipeline_mode = #tpu.pipeline_mode<synchronous>, transform_indices = @transform_3, window_bounds = array<i64: 128, 128>}, {pipeline_mode = #tpu.pipeline_mode<synchronous>, transform_indices = @transform_4, window_bounds = array<i64: 1, 128>}, {pipeline_mode = #tpu.pipeline_mode<synchronous>, transform_indices = @transform_5, window_bounds = array<i64: 128, 128>}, {pipeline_mode = #tpu.pipeline_mode<synchronous>, transform_indices = @transform_6, window_bounds = array<i64: 1, 128>}, {transform_indices = @transform_7, window_bounds = array<i64: 64, 128>}]} {
    %c0 = arith.constant 0 : index
    %c0_0 = arith.constant 0 : index
    %0 = vector.load %arg1[%c0, %c0_0] : memref<64x32xf32, #tpu.memory_space<vmem>>, vector<64x32xf32>
    %c0_1 = arith.constant 0 : index
    %c0_2 = arith.constant 0 : index
    %1 = vector.load %arg2[%c0_1, %c0_2] : memref<32x128xf32, #tpu.memory_space<vmem>>, vector<32x128xf32>
    %cst = arith.constant dense<0.000000e+00> : vector<64x128xf32>
    %2 = tpu.matmul %0, %1, %cst {dimension_numbers = #tpu.dot_dimension_numbers<[1], [0], [0], [1], [0, 0, 1, 1], [], []>} : vector<64x32xf32>, vector<32x128xf32>, vector<64x128xf32> -> vector<64x128xf32>
    %c0_3 = arith.constant 0 : index
    %c0_4 = arith.constant 0 : index
    %3 = vector.load %arg3[%c0_3, %c0_4] : memref<1x128xf32, #tpu.memory_space<vmem>>, vector<1x128xf32>
    %4 = vector.broadcast %3 : vector<1x128xf32> to vector<64x128xf32>
    %5 = arith.addf %2, %4 : vector<64x128xf32>
    %cst_5 = arith.constant 5.000000e-01 : f32
    %6 = vector.broadcast %cst_5 : f32 to vector<64x128xf32>
    %7 = arith.mulf %6, %5 : vector<64x128xf32>
    %8 = math.tanh %7 : vector<64x128xf32>
    %cst_6 = arith.constant 1.000000e+00 : f32
    %9 = vector.broadcast %cst_6 : f32 to vector<64x128xf32>
    %10 = arith.addf %8, %9 : vector<64x128xf32>
    %cst_7 = arith.constant 5.000000e-01 : f32
    %11 = vector.broadcast %cst_7 : f32 to vector<64x128xf32>
    %12 = arith.mulf %11, %10 : vector<64x128xf32>
    %c0_8 = arith.constant 0 : index
    %c0_9 = arith.constant 0 : index
    %13 = vector.load %arg4[%c0_8, %c0_9] : memref<128x128xf32, #tpu.memory_space<vmem>>, vector<128x128xf32>
    %cst_10 = arith.constant dense<0.000000e+00> : vector<64x128xf32>
    %14 = tpu.matmul %12, %13, %cst_10 {dimension_numbers = #tpu.dot_dimension_numbers<[1], [0], [0], [1], [0, 0, 1, 1], [], []>} : vector<64x128xf32>, vector<128x128xf32>, vector<64x128xf32> -> vector<64x128xf32>
    %c0_11 = arith.constant 0 : index
    %c0_12 = arith.constant 0 : index
    %15 = vector.load %arg5[%c0_11, %c0_12] : memref<1x128xf32, #tpu.memory_space<vmem>>, vector<1x128xf32>
    %16 = vector.broadcast %15 : vector<1x128xf32> to vector<64x128xf32>
    %17 = arith.addf %14, %16 : vector<64x128xf32>
    %cst_13 = arith.constant 5.000000e-01 : f32
    %18 = vector.broadcast %cst_13 : f32 to vector<64x128xf32>
    %19 = arith.mulf %18, %17 : vector<64x128xf32>
    %20 = math.tanh %19 : vector<64x128xf32>
    %cst_14 = arith.constant 1.000000e+00 : f32
    %21 = vector.broadcast %cst_14 : f32 to vector<64x128xf32>
    %22 = arith.addf %20, %21 : vector<64x128xf32>
    %cst_15 = arith.constant 5.000000e-01 : f32
    %23 = vector.broadcast %cst_15 : f32 to vector<64x128xf32>
    %24 = arith.mulf %23, %22 : vector<64x128xf32>
    %c0_16 = arith.constant 0 : index
    %c0_17 = arith.constant 0 : index
    %25 = vector.load %arg6[%c0_16, %c0_17] : memref<128x128xf32, #tpu.memory_space<vmem>>, vector<128x128xf32>
    %cst_18 = arith.constant dense<0.000000e+00> : vector<64x128xf32>
    %26 = tpu.matmul %24, %25, %cst_18 {dimension_numbers = #tpu.dot_dimension_numbers<[1], [0], [0], [1], [0, 0, 1, 1], [], []>} : vector<64x128xf32>, vector<128x128xf32>, vector<64x128xf32> -> vector<64x128xf32>
    %c0_19 = arith.constant 0 : index
    %c0_20 = arith.constant 0 : index
    %27 = vector.load %arg7[%c0_19, %c0_20] : memref<1x128xf32, #tpu.memory_space<vmem>>, vector<1x128xf32>
    %28 = vector.broadcast %27 : vector<1x128xf32> to vector<64x128xf32>
    %29 = arith.addf %26, %28 : vector<64x128xf32>
    %c0_21 = arith.constant 0 : index
    %c0_22 = arith.constant 0 : index
    %30 = vector.load %arg8[%c0_21, %c0_22] : memref<64x128xf32, #tpu.memory_space<vmem>>, vector<64x128xf32>
    tpu.vector_store %arg8[%c0_21, %c0_22], %29 {strides = array<i32>} : memref<64x128xf32, #tpu.memory_space<vmem>>, vector<64x128xf32>,
    return
  }
  func.func @transform_0(%arg0: i32) -> (i32, i32) {
    %c0_i32 = arith.constant 0 : i32
    %c0_i32_0 = arith.constant 0 : i32
    return %arg0, %c0_i32 : i32, i32
  }
  func.func @transform_1(%arg0: i32) -> (i32, i32) {
    %c0_i32 = arith.constant 0 : i32
    %c0_i32_0 = arith.constant 0 : i32
    %c0_i32_1 = arith.constant 0 : i32
    return %c0_i32, %c0_i32_0 : i32, i32
  }
  func.func @transform_2(%arg0: i32) -> (i32, i32) {
    %c0_i32 = arith.constant 0 : i32
    %c0_i32_0 = arith.constant 0 : i32
    %c0_i32_1 = arith.constant 0 : i32
    return %c0_i32, %c0_i32_0 : i32, i32
  }
  func.func @transform_3(%arg0: i32) -> (i32, i32) {
    %c0_i32 = arith.constant 0 : i32
    %c0_i32_0 = arith.constant 0 : i32
    %c0_i32_1 = arith.constant 0 : i32
    return %c0_i32, %c0_i32_0 : i32, i32
  }
  func.func @transform_4(%arg0: i32) -> (i32, i32) {
    %c0_i32 = arith.constant 0 : i32
    %c0_i32_0 = arith.constant 0 : i32
    %c0_i32_1 = arith.constant 0 : i32
    return %c0_i32, %c0_i32_0 : i32, i32
  }
  func.func @transform_5(%arg0: i32) -> (i32, i32) {
    %c0_i32 = arith.constant 0 : i32
    %c0_i32_0 = arith.constant 0 : i32
    %c0_i32_1 = arith.constant 0 : i32
    return %c0_i32, %c0_i32_0 : i32, i32
  }
  func.func @transform_6(%arg0: i32) -> (i32, i32) {
    %c0_i32 = arith.constant 0 : i32
    %c0_i32_0 = arith.constant 0 : i32
    %c0_i32_1 = arith.constant 0 : i32
    return %c0_i32, %c0_i32_0 : i32, i32
  }
  func.func @transform_7(%arg0: i32) -> (i32, i32) {
    %c0_i32 = arith.constant 0 : i32
    %c0_i32_0 = arith.constant 0 : i32
    return %arg0, %c0_i32 : i32, i32
  }
}

</mosaic_0001>

<llo_original>
// kernel: mlp_forward.1
$region0: #{mlp_forward.1}
  #allocation0 [shape = 'u32[]', space=smem, size = 0x4, offset = 0x4, fixed_abs, tag = 'smem constant byte address 0x4 - core index']
  #allocation1 [shape = 'u32[144,128]{1,0:T(1,128)}', space=vmem, size = 0x12000, scoped, tag = 'internal scratch']
  %s0 = inlined_call_operand.vmem [shape: f32[64,32], index: 0, kind: input, shape index: {}]
  %s1 = inlined_call_operand.vmem [shape: f32[32,128], index: 1, kind: input, shape index: {}]
  %s2 = inlined_call_operand.vmem [shape: f32[1,128], index: 2, kind: input, shape index: {}]
  %s3 = inlined_call_operand.hbm [shape: f32[128,128], index: 3, kind: input, shape index: {}]
  %s4 = inlined_call_operand.vmem [shape: f32[1,128], index: 4, kind: input, shape index: {}]
  %s5 = inlined_call_operand.hbm [shape: f32[128,128], index: 5, kind: input, shape index: {}]
  %s6 = inlined_call_operand.vmem [shape: f32[1,128], index: 6, kind: input, shape index: {}]
  %s7 = inlined_call_operand.vmem [shape: f32[64,128], index: 7, kind: output, shape index: {}]
  %s8 = sld [smem:[#allocation0]]
  $region46: #{mlp_forward.1} parent=0
    _
  %s10 = ssub.s32 1, %s8
  %s11 = scalar_select 0, %s10, %s8
  $region1: #{mlp_forward.1} parent=0
    #allocation2 [shape = 'u8[65536]{0}', space=vmem, size = 0x10000, scoped, tag = 'input window, operand 3, single buffered']
    #allocation3 [shape = 's32[1]{0}', space=sflag, size = 0x4, scoped, tag = 'scoped memory for mlp_forward.1']
    #allocation4 [shape = 'u8[65536]{0}', space=vmem, size = 0x10000, scoped, tag = 'input window, operand 5, single buffered']
    #allocation5 [shape = 's32[1]{0}', space=sflag, size = 0x4, scoped, tag = 'scoped memory for mlp_forward.1']
    %12 = vsyncpa [#allocation3], 0
    %13 = vsyncpa [#allocation5], 0
    // Predicated region
    $region2: #{mlp_forward.1} parent=1 // pred_check
      _
    $region3: #{mlp_forward.1} parent=1 // pred_check_branch
      %15 = sbr.rel (0) target = $region5
    $region4: #{mlp_forward.1} parent=1 // pred_region
      _
    $region5: #{mlp_forward.1} parent=1 // pred_fallthru
      _
    // Predicated region
    $region6: #{mlp_forward.1} parent=1 // pred_check
      _
    $region7: #{mlp_forward.1} parent=1 // pred_check_branch
      %17 = sbr.rel (0) target = $region9
    $region8: #{mlp_forward.1} parent=1 // pred_region
      _
    $region9: #{mlp_forward.1} parent=1 // pred_fallthru
      _
    // Predicated region
    $region10: #{mlp_forward.1} parent=1 // pred_check
      _
    $region11: #{mlp_forward.1} parent=1 // pred_check_branch
      %19 = sbr.rel (0) target = $region13
    $region12: #{mlp_forward.1} parent=1 // pred_region
      _
    $region13: #{mlp_forward.1} parent=1 // pred_fallthru
      _
    // Predicated region
    $region14: #{mlp_forward.1} parent=1 // pred_check
      _
    $region15: #{mlp_forward.1} parent=1 // pred_check_branch
      %21 = sbr.rel (0) target = $region17
    $region16: #{mlp_forward.1} parent=1 // pred_region
      %s23 = ssub.s32 2048, 2048
      %24 = vsyncadd [#allocation3], %s23
      %s25 = sshll.u32 [#allocation2], 4
      %s26 = int_to_ptr.vmem [resolvable:$true] %s25
      %31 = dma.hbm_to_vmem [thread:$0]  %s3, 2048, %s26, [#allocation3], 128, 128, 8
    $region17: #{mlp_forward.1} parent=1 // pred_fallthru
      _
    // Predicated region
    $region18: #{mlp_forward.1} parent=1 // pred_check
      _
    $region19: #{mlp_forward.1} parent=1 // pred_check_branch
      %33 = sbr.rel (0) target = $region21
    $region20: #{mlp_forward.1} parent=1 // pred_region
      _
    $region21: #{mlp_forward.1} parent=1 // pred_fallthru
      _
    // Predicated region
    $region22: #{mlp_forward.1} parent=1 // pred_check
      _
    $region23: #{mlp_forward.1} parent=1 // pred_check_branch
      %35 = sbr.rel (0) target = $region25
    $region24: #{mlp_forward.1} parent=1 // pred_region
      %s37 = ssub.s32 2048, 2048
      %38 = vsyncadd [#allocation5], %s37
      %s39 = sshll.u32 [#allocation4], 4
      %s40 = int_to_ptr.vmem [resolvable:$true] %s39
      %45 = dma.hbm_to_vmem [thread:$0]  %s5, 2048, %s40, [#allocation5], 128, 128, 8
    $region25: #{mlp_forward.1} parent=1 // pred_fallthru
      _
    // Predicated region
    $region26: #{mlp_forward.1} parent=1 // pred_check
      _
    $region27: #{mlp_forward.1} parent=1 // pred_check_branch
      %47 = sbr.rel (0) target = $region29
    $region28: #{mlp_forward.1} parent=1 // pred_region
      _
    $region29: #{mlp_forward.1} parent=1 // pred_fallthru
      _
    // Predicated region
    $region30: #{mlp_forward.1} parent=1 // pred_check
      _
    $region31: #{mlp_forward.1} parent=1 // pred_check_branch
      %49 = sbr.rel (0) target = $region33
    $region32: #{mlp_forward.1} parent=1 // pred_region
      %50 = dma.done [#allocation3], 2048
    $region33: #{mlp_forward.1} parent=1 // pred_fallthru
      _
    // Predicated region
    $region34: #{mlp_forward.1} parent=1 // pred_check
      _
    $region35: #{mlp_forward.1} parent=1 // pred_check_branch
      %52 = sbr.rel (0) target = $region37
    $region36: #{mlp_forward.1} parent=1 // pred_region
      %53 = dma.done [#allocation5], 2048
    $region37: #{mlp_forward.1} parent=1 // pred_fallthru
      _
    %v54 = vld [vmem:[%s0] sm:$0xff]
    %v55 = vld [vmem:[%s0 + $0x8] sm:$0xff]
    %v56 = vld [vmem:[%s0 + $0x10] sm:$0xff]
    %v57 = vld [vmem:[%s0 + $0x18] sm:$0xff]
    %v58 = vld [vmem:[%s0 + $0x20] sm:$0xff]
    %v59 = vld [vmem:[%s0 + $0x28] sm:$0xff]
    %v60 = vld [vmem:[%s0 + $0x30] sm:$0xff]
    %v61 = vld [vmem:[%s0 + $0x38] sm:$0xff]
    %v62 = vld [vmem:[%s1] sm:$0xff]
    %v63 = vld [vmem:[%s1 + $0x8] sm:$0xff]
    %v64 = vld [vmem:[%s1 + $0x10] sm:$0xff]
    %v65 = vld [vmem:[%s1 + $0x18] sm:$0xff]
    %v66 = vld [vmem:[%s2] sm:$0x1]
    %v68 = vlaneseq
    %v69 = vshrl.u32 %v68, 7
    %v70 = vsub.s32 0, %v69
    %v71 = vrot.slane %v66, %v70
    %vm73 = vcmask 261120
    %v75 = vsel %vm73, %v54, 0
    %v78 = vsel %vm73, %v55, 0
    %v81 = vsel %vm73, %v56, 0
    %v84 = vsel %vm73, %v57, 0
    %v87 = vsel %vm73, %v58, 0
    %v90 = vsel %vm73, %v59, 0
    %v93 = vsel %vm73, %v60, 0
    %v96 = vsel %vm73, %v61, 0
    %98 = vmatprep.subr.mxu0 0.0
    %99 = vmatpush1.msra.mxu0 0.0
    %100 = vmatprep.subr.mxu0 0.0
    %101 = vmatpush1.msra.mxu0 0.0
    %102 = vmatprep.subr.mxu0 0.0
    %103 = vmatpush1.msra.mxu0 0.0
    %104 = vmatprep.subr.mxu0 0.0
    %105 = vmatpush1.msra.mxu0 0.0
    %106 = vmatprep.subr.mxu0 0.0
    %107 = vmatpush1.msra.mxu0 0.0
    %108 = vmatprep.subr.mxu0 0.0
    %109 = vmatpush1.msra.mxu0 0.0
    %110 = vmatprep.subr.mxu0 0.0
    %111 = vmatpush1.msra.mxu0 0.0
    %112 = vmatprep.subr.mxu0 0.0
    %113 = vmatpush1.msra.mxu0 0.0
    %114 = vmatprep.subr.mxu0 0.0
    %115 = vmatpush1.msra.mxu0 0.0
    %116 = vmatprep.subr.mxu0 0.0
    %117 = vmatpush1.msra.mxu0 0.0
    %118 = vmatprep.subr.mxu0 0.0
    %119 = vmatpush1.msra.mxu0 0.0
    %120 = vmatprep.subr.mxu0 0.0
    %121 = vmatpush1.msra.mxu0 0.0
    %122 = vmatprep.subr.mxu0 0.0
    %123 = vmatpush1.msra.mxu0 %v65
    %124 = vmatprep.subr.mxu0 0.0
    %125 = vmatpush1.msra.mxu0 %v64
    %126 = vmatprep.subr.mxu0 0.0
    %127 = vmatpush1.msra.mxu0 %v63
    %128 = vmatprep.subr.mxu0 0.0
    %129 = vmatpush1.msra.mxu0 %v62
    %130 = vmatprep.subr.mxu0 0.0
    %131 = vmatpush2.msra.mxu0 0.0
    %132 = vmatprep.subr.mxu0 0.0
    %133 = vmatpush2.msra.mxu0 0.0
    %134 = vmatprep.subr.mxu0 0.0
    %135 = vmatpush2.msra.mxu0 0.0
    %136 = vmatprep.subr.mxu0 0.0
    %137 = vmatpush2.msra.mxu0 0.0
    %138 = vmatprep.subr.mxu0 0.0
    %139 = vmatpush2.msra.mxu0 0.0
    %140 = vmatprep.subr.mxu0 0.0
    %141 = vmatpush2.msra.mxu0 0.0
    %142 = vmatprep.subr.mxu0 0.0
    %143 = vmatpush2.msra.mxu0 0.0
    %144 = vmatprep.subr.mxu0 0.0
    %145 = vmatpush2.msra.mxu0 0.0
    %146 = vmatprep.subr.mxu0 0.0
    %147 = vmatpush2.msra.mxu0 0.0
    %148 = vmatprep.subr.mxu0 0.0
    %149 = vmatpush2.msra.mxu0 0.0
    %150 = vmatprep.subr.mxu0 0.0
    %151 = vmatpush2.msra.mxu0 0.0
    %152 = vmatprep.subr.mxu0 0.0
    %153 = vmatpush2.msra.mxu0 0.0
    %154 = vmatprep.subr.mxu0 0.0
    %155 = vmatpush2.msra.mxu0 0.0
    %156 = vmatprep.subr.mxu0 0.0
    %157 = vmatpush2.msra.mxu0 0.0
    %158 = vmatprep.subr.mxu0 0.0
    %159 = vmatpush2.msra.mxu0 0.0
    %160 = vmatprep.subr.mxu0 0.0
    %161 = vmatpush2.msra.mxu0 0.0
    %162 = vmatprep.mubr.f32.mxu0 0.0
    %163 = vmatmul.mubr.f32.gmra.mxu0 %v75
    %v164 = vpop.f32.mrf.mxu0
    %v165 = vadd.f32 %v71, %v164
    %v166 = vpop.f32.mrf.mxu0
    %167 = vmatprep.mubr.f32.mxu0 0.0
    %168 = vmatmul.mubr.f32.gmra.mxu0 %v78
    %v169 = vpop.f32.mrf.mxu0
    %v170 = vadd.f32 %v71, %v169
    %v171 = vpop.f32.mrf.mxu0
    %172 = vmatprep.mubr.f32.mxu0 0.0
    %173 = vmatmul.mubr.f32.gmra.mxu0 %v81
    %v174 = vpop.f32.mrf.mxu0
    %v175 = vadd.f32 %v71, %v174
    %v176 = vpop.f32.mrf.mxu0
    %177 = vmatprep.mubr.f32.mxu0 0.0
    %178 = vmatmul.mubr.f32.gmra.mxu0 %v84
    %v179 = vpop.f32.mrf.mxu0
    %v180 = vadd.f32 %v71, %v179
    %v181 = vpop.f32.mrf.mxu0
    %182 = vmatprep.mubr.f32.mxu0 0.0
    %183 = vmatmul.mubr.f32.gmra.mxu0 %v87
    %v184 = vpop.f32.mrf.mxu0
    %v185 = vadd.f32 %v71, %v184
    %v186 = vpop.f32.mrf.mxu0
    %187 = vmatprep.mubr.f32.mxu0 0.0
    %188 = vmatmul.mubr.f32.gmra.mxu0 %v90
    %v189 = vpop.f32.mrf.mxu0
    %v190 = vadd.f32 %v71, %v189
    %v191 = vpop.f32.mrf.mxu0
    %192 = vmatprep.mubr.f32.mxu0 0.0
    %193 = vmatmul.mubr.f32.gmra.mxu0 %v93
    %v194 = vpop.f32.mrf.mxu0
    %v195 = vadd.f32 %v71, %v194
    %v196 = vpop.f32.mrf.mxu0
    %197 = vmatprep.mubr.f32.mxu0 0.0
    %198 = vmatmul.mubr.f32.gmra.mxu0 %v96
    %v199 = vpop.f32.mrf.mxu0
    %v200 = vadd.f32 %v71, %v199
    %v201 = vpop.f32.mrf.mxu0
    %202 = vdwg.mxu0
    %v203 = vmul.f32 %v165, 0.5
    %v204 = vmul.f32 %v170, 0.5
    %v205 = vmul.f32 %v175, 0.5
    %v206 = vmul.f32 %v180, 0.5
    %v207 = vmul.f32 %v185, 0.5
    %v208 = vmul.f32 %v190, 0.5
    %v209 = vmul.f32 %v195, 0.5
    %v210 = vmul.f32 %v200, 0.5
    %v211 = vtanh.pop %v203
    %v212 = vtanh.pop %v204
    %v213 = vtanh.pop %v205
    %v214 = vtanh.pop %v206
    %v215 = vtanh.pop %v207
    %v216 = vtanh.pop %v208
    %v217 = vtanh.pop %v209
    %v218 = vtanh.pop %v210
    %v219 = vadd.f32 %v211, 1.0
    %v220 = vadd.f32 %v212, 1.0
    %v221 = vadd.f32 %v213, 1.0
    %v222 = vadd.f32 %v214, 1.0
    %v223 = vadd.f32 %v215, 1.0
    %v224 = vadd.f32 %v216, 1.0
    %v225 = vadd.f32 %v217, 1.0
    %v226 = vadd.f32 %v218, 1.0
    %v227 = vmul.f32 %v219, 0.5
    %v228 = vmul.f32 %v220, 0.5
    %v229 = vmul.f32 %v221, 0.5
    %v230 = vmul.f32 %v222, 0.5
    %v231 = vmul.f32 %v223, 0.5
    %v232 = vmul.f32 %v224, 0.5
    %v233 = vmul.f32 %v225, 0.5
    %v234 = vmul.f32 %v226, 0.5
    %v235 = vld [vmem:[#allocation2] sm:$0xff]
    %v236 = vld [vmem:[#allocation2 + $0x8] sm:$0xff]
    %v237 = vld [vmem:[#allocation2 + $0x10] sm:$0xff]
    %v238 = vld [vmem:[#allocation2 + $0x18] sm:$0xff]
    %v239 = vld [vmem:[#allocation2 + $0x20] sm:$0xff]
    %v240 = vld [vmem:[#allocation2 + $0x28] sm:$0xff]
    %v241 = vld [vmem:[#allocation2 + $0x30] sm:$0xff]
    %v242 = vld [vmem:[#allocation2 + $0x38] sm:$0xff]
    %v243 = vld [vmem:[#allocation2 + $0x40] sm:$0xff]
    %v244 = vld [vmem:[#allocation2 + $0x48] sm:$0xff]
    %v245 = vld [vmem:[#allocation2 + $0x50] sm:$0xff]
    %v246 = vld [vmem:[#allocation2 + $0x58] sm:$0xff]
    %v247 = vld [vmem:[#allocation2 + $0x60] sm:$0xff]
    %v248 = vld [vmem:[#allocation2 + $0x68] sm:$0xff]
    %v249 = vld [vmem:[#allocation2 + $0x70] sm:$0xff]
    %v250 = vld [vmem:[#allocation2 + $0x78] sm:$0xff]
    %v251 = vld [vmem:[%s4] sm:$0x1]
    %v253 = vlaneseq
    %v254 = vshrl.u32 %v253, 7
    %v255 = vsub.s32 0, %v254
    %v256 = vrot.slane %v251, %v255
    %258 = vmatprep.subr.mxu0 0.0
    %259 = vmatpush1.msra.mxu0 %v250
    %260 = vmatprep.subr.mxu0 0.0
    %261 = vmatpush1.msra.mxu0 %v249
    %262 = vmatprep.subr.mxu0 0.0
    %263 = vmatpush1.msra.mxu0 %v248
    %264 = vmatprep.subr.mxu0 0.0
    %265 = vmatpush1.msra.mxu0 %v247
    %266 = vmatprep.subr.mxu0 0.0
    %267 = vmatpush1.msra.mxu0 %v246
    %268 = vmatprep.subr.mxu0 0.0
    %269 = vmatpush1.msra.mxu0 %v245
    %270 = vmatprep.subr.mxu0 0.0
    %271 = vmatpush1.msra.mxu0 %v244
    %272 = vmatprep.subr.mxu0 0.0
    %273 = vmatpush1.msra.mxu0 %v243
    %274 = vmatprep.subr.mxu0 0.0
    %275 = vmatpush1.msra.mxu0 %v242
    %276 = vmatprep.subr.mxu0 0.0
    %277 = vmatpush1.msra.mxu0 %v241
    %278 = vmatprep.subr.mxu0 0.0
    %279 = vmatpush1.msra.mxu0 %v240
    %280 = vmatprep.subr.mxu0 0.0
    %281 = vmatpush1.msra.mxu0 %v239
    %282 = vmatprep.subr.mxu0 0.0
    %283 = vmatpush1.msra.mxu0 %v238
    %284 = vmatprep.subr.mxu0 0.0
    %285 = vmatpush1.msra.mxu0 %v237
    %286 = vmatprep.subr.mxu0 0.0
    %287 = vmatpush1.msra.mxu0 %v236
    %288 = vmatprep.subr.mxu0 0.0
    %289 = vmatpush1.msra.mxu0 %v235
    %290 = vmatprep.subr.mxu0 0.0
    %291 = vmatpush2.msra.mxu0 0.0
    %292 = vmatprep.subr.mxu0 0.0
    %293 = vmatpush2.msra.mxu0 0.0
    %294 = vmatprep.subr.mxu0 0.0
    %295 = vmatpush2.msra.mxu0 0.0
    %296 = vmatprep.subr.mxu0 0.0
    %297 = vmatpush2.msra.mxu0 0.0
    %298 = vmatprep.subr.mxu0 0.0
    %299 = vmatpush2.msra.mxu0 0.0
    %300 = vmatprep.subr.mxu0 0.0
    %301 = vmatpush2.msra.mxu0 0.0
    %302 = vmatprep.subr.mxu0 0.0
    %303 = vmatpush2.msra.mxu0 0.0
    %304 = vmatprep.subr.mxu0 0.0
    %305 = vmatpush2.msra.mxu0 0.0
    %306 = vmatprep.subr.mxu0 0.0
    %307 = vmatpush2.msra.mxu0 0.0
    %308 = vmatprep.subr.mxu0 0.0
    %309 = vmatpush2.msra.mxu0 0.0
    %310 = vmatprep.subr.mxu0 0.0
    %311 = vmatpush2.msra.mxu0 0.0
    %312 = vmatprep.subr.mxu0 0.0
    %313 = vmatpush2.msra.mxu0 0.0
    %314 = vmatprep.subr.mxu0 0.0
    %315 = vmatpush2.msra.mxu0 0.0
    %316 = vmatprep.subr.mxu0 0.0
    %317 = vmatpush2.msra.mxu0 0.0
    %318 = vmatprep.subr.mxu0 0.0
    %319 = vmatpush2.msra.mxu0 0.0
    %320 = vmatprep.subr.mxu0 0.0
    %321 = vmatpush2.msra.mxu0 0.0
    %322 = vmatprep.mubr.f32.mxu0 0.0
    %323 = vmatmul.mubr.f32.gmra.mxu0 %v227
    %v324 = vpop.f32.mrf.mxu0
    %v325 = vadd.f32 %v256, %v324
    %v326 = vpop.f32.mrf.mxu0
    %327 = vmatprep.mubr.f32.mxu0 0.0
    %328 = vmatmul.mubr.f32.gmra.mxu0 %v228
    %v329 = vpop.f32.mrf.mxu0
    %v330 = vadd.f32 %v256, %v329
    %v331 = vpop.f32.mrf.mxu0
    %332 = vmatprep.mubr.f32.mxu0 0.0
    %333 = vmatmul.mubr.f32.gmra.mxu0 %v229
    %v334 = vpop.f32.mrf.mxu0
    %v335 = vadd.f32 %v256, %v334
    %v336 = vpop.f32.mrf.mxu0
    %337 = vmatprep.mubr.f32.mxu0 0.0
    %338 = vmatmul.mubr.f32.gmra.mxu0 %v230
    %v339 = vpop.f32.mrf.mxu0
    %v340 = vadd.f32 %v256, %v339
    %v341 = vpop.f32.mrf.mxu0
    %342 = vmatprep.mubr.f32.mxu0 0.0
    %343 = vmatmul.mubr.f32.gmra.mxu0 %v231
    %v344 = vpop.f32.mrf.mxu0
    %v345 = vadd.f32 %v256, %v344
    %v346 = vpop.f32.mrf.mxu0
    %347 = vmatprep.mubr.f32.mxu0 0.0
    %348 = vmatmul.mubr.f32.gmra.mxu0 %v232
    %v349 = vpop.f32.mrf.mxu0
    %v350 = vadd.f32 %v256, %v349
    %v351 = vpop.f32.mrf.mxu0
    %352 = vmatprep.mubr.f32.mxu0 0.0
    %353 = vmatmul.mubr.f32.gmra.mxu0 %v233
    %v354 = vpop.f32.mrf.mxu0
    %v355 = vadd.f32 %v256, %v354
    %v356 = vpop.f32.mrf.mxu0
    %357 = vmatprep.mubr.f32.mxu0 0.0
    %358 = vmatmul.mubr.f32.gmra.mxu0 %v234
    %v359 = vpop.f32.mrf.mxu0
    %v360 = vadd.f32 %v256, %v359
    %v361 = vpop.f32.mrf.mxu0
    %362 = vdwg.mxu0
    %v363 = vmul.f32 %v325, 0.5
    %v364 = vmul.f32 %v330, 0.5
    %v365 = vmul.f32 %v335, 0.5
    %v366 = vmul.f32 %v340, 0.5
    %v367 = vmul.f32 %v345, 0.5
    %v368 = vmul.f32 %v350, 0.5
    %v369 = vmul.f32 %v355, 0.5
    %v370 = vmul.f32 %v360, 0.5
    %v371 = vtanh.pop %v363
    %v372 = vtanh.pop %v364
    %v373 = vtanh.pop %v365
    %v374 = vtanh.pop %v366
    %v375 = vtanh.pop %v367
    %v376 = vtanh.pop %v368
    %v377 = vtanh.pop %v369
    %v378 = vtanh.pop %v370
    %v379 = vadd.f32 %v371, 1.0
    %v380 = vadd.f32 %v372, 1.0
    %v381 = vadd.f32 %v373, 1.0
    %v382 = vadd.f32 %v374, 1.0
    %v383 = vadd.f32 %v375, 1.0
    %v384 = vadd.f32 %v376, 1.0
    %v385 = vadd.f32 %v377, 1.0
    %v386 = vadd.f32 %v378, 1.0
    %v387 = vmul.f32 %v379, 0.5
    %v388 = vmul.f32 %v380, 0.5
    %v389 = vmul.f32 %v381, 0.5
    %v390 = vmul.f32 %v382, 0.5
    %v391 = vmul.f32 %v383, 0.5
    %v392 = vmul.f32 %v384, 0.5
    %v393 = vmul.f32 %v385, 0.5
    %v394 = vmul.f32 %v386, 0.5
    %v395 = vld [vmem:[#allocation4] sm:$0xff]
    %v396 = vld [vmem:[#allocation4 + $0x8] sm:$0xff]
    %v397 = vld [vmem:[#allocation4 + $0x10] sm:$0xff]
    %v398 = vld [vmem:[#allocation4 + $0x18] sm:$0xff]
    %v399 = vld [vmem:[#allocation4 + $0x20] sm:$0xff]
    %v400 = vld [vmem:[#allocation4 + $0x28] sm:$0xff]
    %v401 = vld [vmem:[#allocation4 + $0x30] sm:$0xff]
    %v402 = vld [vmem:[#allocation4 + $0x38] sm:$0xff]
    %v403 = vld [vmem:[#allocation4 + $0x40] sm:$0xff]
    %v404 = vld [vmem:[#allocation4 + $0x48] sm:$0xff]
    %v405 = vld [vmem:[#allocation4 + $0x50] sm:$0xff]
    %v406 = vld [vmem:[#allocation4 + $0x58] sm:$0xff]
    %v407 = vld [vmem:[#allocation4 + $0x60] sm:$0xff]
    %v408 = vld [vmem:[#allocation4 + $0x68] sm:$0xff]
    %v409 = vld [vmem:[#allocation4 + $0x70] sm:$0xff]
    %v410 = vld [vmem:[#allocation4 + $0x78] sm:$0xff]
    %v411 = vld [vmem:[%s6] sm:$0x1]
    %v413 = vlaneseq
    %v414 = vshrl.u32 %v413, 7
    %v415 = vsub.s32 0, %v414
    %v416 = vrot.slane %v411, %v415
    %418 = vmatprep.subr.mxu0 0.0
    %419 = vmatpush1.msra.mxu0 %v410
    %420 = vmatprep.subr.mxu0 0.0
    %421 = vmatpush1.msra.mxu0 %v409
    %422 = vmatprep.subr.mxu0 0.0
    %423 = vmatpush1.msra.mxu0 %v408
    %424 = vmatprep.subr.mxu0 0.0
    %425 = vmatpush1.msra.mxu0 %v407
    %426 = vmatprep.subr.mxu0 0.0
    %427 = vmatpush1.msra.mxu0 %v406
    %428 = vmatprep.subr.mxu0 0.0
    %429 = vmatpush1.msra.mxu0 %v405
    %430 = vmatprep.subr.mxu0 0.0
    %431 = vmatpush1.msra.mxu0 %v404
    %432 = vmatprep.subr.mxu0 0.0
    %433 = vmatpush1.msra.mxu0 %v403
    %434 = vmatprep.subr.mxu0 0.0
    %435 = vmatpush1.msra.mxu0 %v402
    %436 = vmatprep.subr.mxu0 0.0
    %437 = vmatpush1.msra.mxu0 %v401
    %438 = vmatprep.subr.mxu0 0.0
    %439 = vmatpush1.msra.mxu0 %v400
    %440 = vmatprep.subr.mxu0 0.0
    %441 = vmatpush1.msra.mxu0 %v399
    %442 = vmatprep.subr.mxu0 0.0
    %443 = vmatpush1.msra.mxu0 %v398
    %444 = vmatprep.subr.mxu0 0.0
    %445 = vmatpush1.msra.mxu0 %v397
    %446 = vmatprep.subr.mxu0 0.0
    %447 = vmatpush1.msra.mxu0 %v396
    %448 = vmatprep.subr.mxu0 0.0
    %449 = vmatpush1.msra.mxu0 %v395
    %450 = vmatprep.subr.mxu0 0.0
    %451 = vmatpush2.msra.mxu0 0.0
    %452 = vmatprep.subr.mxu0 0.0
    %453 = vmatpush2.msra.mxu0 0.0
    %454 = vmatprep.subr.mxu0 0.0
    %455 = vmatpush2.msra.mxu0 0.0
    %456 = vmatprep.subr.mxu0 0.0
    %457 = vmatpush2.msra.mxu0 0.0
    %458 = vmatprep.subr.mxu0 0.0
    %459 = vmatpush2.msra.mxu0 0.0
    %460 = vmatprep.subr.mxu0 0.0
    %461 = vmatpush2.msra.mxu0 0.0
    %462 = vmatprep.subr.mxu0 0.0
    %463 = vmatpush2.msra.mxu0 0.0
    %464 = vmatprep.subr.mxu0 0.0
    %465 = vmatpush2.msra.mxu0 0.0
    %466 = vmatprep.subr.mxu0 0.0
    %467 = vmatpush2.msra.mxu0 0.0
    %468 = vmatprep.subr.mxu0 0.0
    %469 = vmatpush2.msra.mxu0 0.0
    %470 = vmatprep.subr.mxu0 0.0
    %471 = vmatpush2.msra.mxu0 0.0
    %472 = vmatprep.subr.mxu0 0.0
    %473 = vmatpush2.msra.mxu0 0.0
    %474 = vmatprep.subr.mxu0 0.0
    %475 = vmatpush2.msra.mxu0 0.0
    %476 = vmatprep.subr.mxu0 0.0
    %477 = vmatpush2.msra.mxu0 0.0
    %478 = vmatprep.subr.mxu0 0.0
    %479 = vmatpush2.msra.mxu0 0.0
    %480 = vmatprep.subr.mxu0 0.0
    %481 = vmatpush2.msra.mxu0 0.0
    %482 = vmatprep.mubr.f32.mxu0 0.0
    %483 = vmatmul.mubr.f32.gmra.mxu0 %v387
    %v484 = vpop.f32.mrf.mxu0
    %v485 = vadd.f32 %v416, %v484
    %v486 = vpop.f32.mrf.mxu0
    %487 = vmatprep.mubr.f32.mxu0 0.0
    %488 = vmatmul.mubr.f32.gmra.mxu0 %v388
    %v489 = vpop.f32.mrf.mxu0
    %v490 = vadd.f32 %v416, %v489
    %v491 = vpop.f32.mrf.mxu0
    %492 = vmatprep.mubr.f32.mxu0 0.0
    %493 = vmatmul.mubr.f32.gmra.mxu0 %v389
    %v494 = vpop.f32.mrf.mxu0
    %v495 = vadd.f32 %v416, %v494
    %v496 = vpop.f32.mrf.mxu0
    %497 = vmatprep.mubr.f32.mxu0 0.0
    %498 = vmatmul.mubr.f32.gmra.mxu0 %v390
    %v499 = vpop.f32.mrf.mxu0
    %v500 = vadd.f32 %v416, %v499
    %v501 = vpop.f32.mrf.mxu0
    %502 = vmatprep.mubr.f32.mxu0 0.0
    %503 = vmatmul.mubr.f32.gmra.mxu0 %v391
    %v504 = vpop.f32.mrf.mxu0
    %v505 = vadd.f32 %v416, %v504
    %v506 = vpop.f32.mrf.mxu0
    %507 = vmatprep.mubr.f32.mxu0 0.0
    %508 = vmatmul.mubr.f32.gmra.mxu0 %v392
    %v509 = vpop.f32.mrf.mxu0
    %v510 = vadd.f32 %v416, %v509
    %v511 = vpop.f32.mrf.mxu0
    %512 = vmatprep.mubr.f32.mxu0 0.0
    %513 = vmatmul.mubr.f32.gmra.mxu0 %v393
    %v514 = vpop.f32.mrf.mxu0
    %v515 = vadd.f32 %v416, %v514
    %v516 = vpop.f32.mrf.mxu0
    %517 = vmatprep.mubr.f32.mxu0 0.0
    %518 = vmatmul.mubr.f32.gmra.mxu0 %v394
    %v519 = vpop.f32.mrf.mxu0
    %v520 = vadd.f32 %v416, %v519
    %v521 = vpop.f32.mrf.mxu0
    %522 = vdwg.mxu0
    %523 = vst [vmem:[%s7] sm:$0xff] %v485
    %524 = vst [vmem:[%s7 + $0x8] sm:$0xff] %v490
    %525 = vst [vmem:[%s7 + $0x10] sm:$0xff] %v495
    %526 = vst [vmem:[%s7 + $0x18] sm:$0xff] %v500
    %527 = vst [vmem:[%s7 + $0x20] sm:$0xff] %v505
    %528 = vst [vmem:[%s7 + $0x28] sm:$0xff] %v510
    %529 = vst [vmem:[%s7 + $0x30] sm:$0xff] %v515
    %530 = vst [vmem:[%s7 + $0x38] sm:$0xff] %v520
    // Predicated region
    $region38: #{mlp_forward.1} parent=1 // pred_check
      _
    $region39: #{mlp_forward.1} parent=1 // pred_check_branch
      %532 = sbr.rel (0) target = $region41
    $region40: #{mlp_forward.1} parent=1 // pred_region
      _
    $region41: #{mlp_forward.1} parent=1 // pred_fallthru
      _
    // Predicated region
    $region42: #{mlp_forward.1} parent=1 // pred_check
      _
    $region43: #{mlp_forward.1} parent=1 // pred_check_branch
      %534 = sbr.rel (0) target = $region45
    $region44: #{mlp_forward.1} parent=1 // pred_region
      _
    $region45: #{mlp_forward.1} parent=1 // pred_fallthru
      _
    %535 = vsyncpa [#allocation3], 1
    %536 = vsyncpa [#allocation5], 1

</llo_original>
